<compile_context>
chip_gen: v5e
topology: v5e:2x2
jax: 0.10.0
libtpu: 0.0.40
codegen_flags: <defaults>
</compile_context>

<pallas_src>
import functools
import math

import numpy as np
import jax
import jax.numpy as jnp
from jax import lax
from jax.experimental import pallas as pl
from jax.experimental.pallas import tpu as pltpu


# ----------------------------- device-aware knobs -----------------------------

def _device_kind():
    try:
        return jax.devices()[0].device_kind.lower()
    except Exception:
        return ""


_KIND = _device_kind()
# v7x: 64 MiB VMEM / TensorCore; v2/v3: 16 MiB; v4/v5e/v6e: 128 MiB physical.
_SMALL_VMEM = ("7" in _KIND) or ("v2" in _KIND) or ("v3" in _KIND)
if ("v2" in _KIND) or ("v3" in _KIND):
    _VMEM_LIMIT = 12 * 1024 * 1024
elif "7" in _KIND:
    _VMEM_LIMIT = 40 * 1024 * 1024
else:
    _VMEM_LIMIT = 80 * 1024 * 1024       # v5e/v6e: use the 128 MiB we have
_CAP_QKV = 512 if _SMALL_VMEM else 1024  # row-tile cap for kernel 1
_CAP_FF = 256 if _SMALL_VMEM else 512    # row-tile cap for kernel 3
_FF_CHUNK = 1024                         # d_ff columns processed per inner step


@functools.lru_cache(maxsize=1)
def _single_buffer_ok():
    """Probe whether pipeline_mode=pl.Buffered(1) lowers (and is correct) here."""
    try:
        def k(x_ref, o_ref):
            o_ref[...] = x_ref[...] + 1.0

        x = jnp.arange(8 * 128, dtype=jnp.float32).reshape(8, 128)
        y = pl.pallas_call(
            k,
            out_shape=jax.ShapeDtypeStruct((8, 128), jnp.float32),
            grid=(1,),
            in_specs=[pl.BlockSpec((8, 128), lambda i: (0, 0),
                                   pipeline_mode=pl.Buffered(1))],
            out_specs=pl.BlockSpec((8, 128), lambda i: (0, 0)),
        )(x)
        return bool(jnp.allclose(y, x + 1.0))
    except Exception:
        return False


def _resident(block_shape):
    """BlockSpec for an operand identical at every grid step (weights/biases).

    Single-buffered when supported: constant-index blocks need no double
    buffering, and at realistic d/d_ff the 2x weight footprint is what blows
    v7x's 64 MiB VMEM / forces tiny row tiles.
    """
    idx = lambda i: (0,) * len(block_shape)
    if _single_buffer_ok():
        return pl.BlockSpec(block_shape, idx, pipeline_mode=pl.Buffered(1))
    return pl.BlockSpec(block_shape, idx)


def _round_up(x, m):
    return ((x + m - 1) // m) * m


def _pick_tile(m, cap):
    """Row tile: multiple of 8 (sublane), capped so weights + tile fit VMEM."""
    if m <= cap:
        return _round_up(m, 8)
    return cap


def _pad_rows(a, m_pad):
    m = a.shape[0]
    if m == m_pad:
        return a
    return jnp.pad(a, ((0, m_pad - m), (0, 0)))


# ------------------- kernel 1: norm1 + fused QKV projection -------------------

def _norm_qkv_kernel(x_ref, a_ref, b_ref, w_ref, wb_ref, o_ref, *, eps, d):
    x = x_ref[...]                                              # (TM, D) f32
    mean = jnp.mean(x, axis=-1, keepdims=True)
    xc = x - mean
    var = jnp.sum(xc * xc, axis=-1, keepdims=True) / (d - 1)    # torch.std (ddof=1)
    x2 = a_ref[...] * xc / (jnp.sqrt(var) + eps) + b_ref[...]   # NormLayer, f32
    qkv = jnp.dot(x2.astype(jnp.bfloat16), w_ref[...],
                  preferred_element_type=jnp.float32) + wb_ref[...]
    o_ref[...] = qkv.astype(o_ref.dtype)                        # bf16 hand-off


def norm_qkv(x_flat, alpha, bias, wqkv_bf16, bqkv, eps=1e-6):
    m, d = x_flat.shape
    d3 = wqkv_bf16.shape[1]
    tm = _pick_tile(m, _CAP_QKV)
    m_pad = _round_up(m, tm)
    xp = _pad_rows(x_flat, m_pad)
    cost = pl.CostEstimate(
        flops=2 * m_pad * d * d3 + 8 * m_pad * d,
        transcendentals=0,
        bytes_accessed=m_pad * d * 4 + d * d3 * 2 + m_pad * d3 * 2,
    )
    out = pl.pallas_call(
        functools.partial(_norm_qkv_kernel, eps=eps, d=d),
        out_shape=jax.ShapeDtypeStruct((m_pad, d3), jnp.bfloat16),
        grid=(m_pad // tm,),
        in_specs=[
            pl.BlockSpec((tm, d), lambda i: (i, 0)),   # x row tile
            _resident((1, d)),                         # norm1 alpha
            _resident((1, d)),                         # norm1 bias
            _resident((d, d3)),                        # Wqkv bf16 (Q cols pre-scaled)
            _resident((1, d3)),                        # bqkv f32
        ],
        out_specs=pl.BlockSpec((tm, d3), lambda i: (i, 0)),
        compiler_params=pltpu.CompilerParams(
            dimension_semantics=("parallel",),
            vmem_limit_bytes=_VMEM_LIMIT,
        ),
        cost_estimate=cost,
    )(xp, alpha, bias, wqkv_bf16, bqkv)
    return out[:m]


# ------------------------- kernel 2: multi-head attention -------------------------

def _attention_kernel(qkv_ref, mask_ref, o_ref, *, heads, d_model):
    # One batch element, all heads.  qkv_ref: (1, S, 3D) bf16; mask_ref: (1,1,S) f32.
    dk = d_model // heads
    qkv = qkv_ref[0]                                            # (S, 3D) bf16
    seq = qkv.shape[0]
    # Additive pad mask, built + broadcast ONCE (hoisted out of the head loop;
    # JAX does not CSE broadcast_in_dim).
    madd = jnp.where(mask_ref[0] == 0.0, jnp.float32(-1e9), jnp.float32(0.0))
    madd = pl.broadcast_to(madd, (seq, seq))                    # (S, S) f32
    outs = []
    for h in range(heads):                                      # unrolled at trace time
        lo = h * dk
        q = qkv[:, lo:lo + dk]                   # 1/sqrt(dk) already in Wq/bq
        k = qkv[:, d_model + lo:d_model + lo + dk]
        v = qkv[:, 2 * d_model + lo:2 * d_model + lo + dk]
        s = lax.dot_general(q, k, (((1,), (1,)), ((), ())),
                            preferred_element_type=jnp.float32) + madd
        s = s - jnp.max(s, axis=-1, keepdims=True)
        e = jnp.exp(s)
        p = e * pl.reciprocal(jnp.sum(e, axis=-1, keepdims=True), approx=True)
        outs.append(jnp.dot(p.astype(jnp.bfloat16), v,
                            preferred_element_type=jnp.float32))
    # Concatenate heads in-register -> one lane-dense (S, D) store
    # (no per-head masked vst.msk partial stores); bf16 hand-off to kernel 3.
    o_ref[0, :, :] = jnp.concatenate(outs, axis=-1).astype(o_ref.dtype)


def mha(qkv_bsd, mask, heads):
    # Note: for large S this holds the (S, 3D) slab + (S, S) scores in VMEM;
    # a flash-style q/kv-tiled variant would be needed at S >~ 2K on v7x.
    B, S, d3 = qkv_bsd.shape
    d_model = d3 // 3
    dk = d_model // heads
    cost = pl.CostEstimate(
        flops=4 * B * heads * S * S * dk,
        transcendentals=B * heads * S * S,
        bytes_accessed=B * S * d3 * 2 + B * S * d_model * 2 + B * S * 4,
    )
    return pl.pallas_call(
        functools.partial(_attention_kernel, heads=heads, d_model=d_model),
        out_shape=jax.ShapeDtypeStruct((B, S, d_model), jnp.bfloat16),
        grid=(B,),
        in_specs=[
            pl.BlockSpec((1, S, d3), lambda b: (b, 0, 0)),
            pl.BlockSpec((1, 1, S), lambda b: (b, 0, 0)),
        ],
        out_specs=pl.BlockSpec((1, S, d_model), lambda b: (b, 0, 0)),
        compiler_params=pltpu.CompilerParams(
            dimension_semantics=("parallel",),
            vmem_limit_bytes=_VMEM_LIMIT,
        ),
        cost_estimate=cost,
    )(qkv_bsd, mask)


# --------- kernel 3: out-proj + residual + norm2 + FeedForward + residual ---------

def _proj_norm_ff_kernel(attn_ref, x_ref, wo_ref, bo_ref, a2_ref, nb2_ref,
                         w1_ref, b1_ref, w2_ref, b2_ref, o_ref,
                         *, eps, d, d_ff, ff_chunk):
    x = x_ref[...]                                              # (TM, D) f32 residual
    # attention output projection + residual (attn arrives bf16, MXU-ready)
    x1 = (x + jnp.dot(attn_ref[...], wo_ref[...],
                      preferred_element_type=jnp.float32) + bo_ref[...])
    # norm2 (torch.std ddof=1, (std + eps) denominator), f32
    mean = jnp.mean(x1, axis=-1, keepdims=True)
    xc = x1 - mean
    var = jnp.sum(xc * xc, axis=-1, keepdims=True) / (d - 1)
    x2 = (a2_ref[...] * xc / (jnp.sqrt(var) + eps)
          + nb2_ref[...]).astype(jnp.bfloat16)
    # feed-forward (linear1 -> relu -> linear2) + residual; d_ff processed in
    # ff_chunk-column slabs so the live f32 hidden stays small at big d_ff.
    acc = x1 + b2_ref[...]
    for c in range(0, d_ff, ff_chunk):
        cw = min(ff_chunk, d_ff - c)
        h = jnp.dot(x2, w1_ref[:, c:c + cw],
                    preferred_element_type=jnp.float32) + b1_ref[:, c:c + cw]
        h = jnp.maximum(h, 0.0).astype(jnp.bfloat16)
        acc = acc + jnp.dot(h, w2_ref[c:c + cw, :],
                            preferred_element_type=jnp.float32)
    o_ref[...] = acc


def proj_norm_ff(attn_flat, x_flat, wo, bo, alpha2, nbias2, w1, b1, w2, b2,
                 eps=1e-6):
    m, d = x_flat.shape
    d_ff = w1.shape[1]
    tm = _pick_tile(m, _CAP_FF)
    m_pad = _round_up(m, tm)
    ap = _pad_rows(attn_flat, m_pad)
    xp = _pad_rows(x_flat, m_pad)
    ff_chunk = min(d_ff, _FF_CHUNK)
    cost = pl.CostEstimate(
        flops=2 * m_pad * d * d + 4 * m_pad * d * d_ff + 8 * m_pad * d,
        transcendentals=0,
        bytes_accessed=(m_pad * d * (2 + 4 + 4)
                        + (d * d + 2 * d * d_ff) * 2 + (2 * d + d_ff) * 4),
    )
    out = pl.pallas_call(
        functools.partial(_proj_norm_ff_kernel, eps=eps, d=d,
                          d_ff=d_ff, ff_chunk=ff_chunk),
        out_shape=jax.ShapeDtypeStruct((m_pad, d), jnp.float32),
        grid=(m_pad // tm,),
        in_specs=[
            pl.BlockSpec((tm, d), lambda i: (i, 0)),     # attn tile (bf16)
            pl.BlockSpec((tm, d), lambda i: (i, 0)),     # residual x tile (f32)
            _resident((d, d)),                           # Wo bf16
            _resident((1, d)),                           # bo
            _resident((1, d)),                           # norm2 alpha
            _resident((1, d)),                           # norm2 bias
            _resident((d, d_ff)),                        # W1 bf16
            _resident((1, d_ff)),                        # b1
            _resident((d_ff, d)),                        # W2 bf16
            _resident((1, d)),                           # b2
        ],
        out_specs=pl.BlockSpec((tm, d), lambda i: (i, 0)),
        compiler_params=pltpu.CompilerParams(
            dimension_semantics=("parallel",),
            vmem_limit_bytes=_VMEM_LIMIT,
        ),
        cost_estimate=cost,
    )(ap, xp, wo, bo, alpha2, nbias2, w1, b1, w2, b2)
    return out[:m]


# ------------------------------- model glue -------------------------------

def init_encoder_layer_params(key, d_model, heads, d_ff=2048):
    ks = jax.random.split(key, 6)

    def dense(k, din, dout, scale=0.02):
        kw, kb = jax.random.split(k)
        w = jax.random.normal(kw, (din, dout), jnp.float32) * scale
        b = jax.random.normal(kb, (1, dout), jnp.float32) * scale
        return w, b

    wq, bq = dense(ks[0], d_model, d_model)
    wk, bk = dense(ks[1], d_model, d_model)
    wv, bv = dense(ks[2], d_model, d_model)
    wo, bo = dense(ks[3], d_model, d_model)
    w1, b1 = dense(ks[4], d_model, d_ff)
    w2, b2 = dense(ks[5], d_ff, d_model)
    # Fold the softmax 1/sqrt(d_k) scale into the Q projection: (xWq*s)K^T ==
    # (xWq K^T)*s, so no per-head (S,S) multiply is needed inside the kernel.
    inv_sqrt_dk = 1.0 / math.sqrt(d_model // heads)
    wq = wq * inv_sqrt_dk
    bq = bq * inv_sqrt_dk
    return {
        "heads": heads,
        # fused QKV weight (D, 3D); MXU operands stored in bf16, the rest f32
        "wqkv": jnp.concatenate([wq, wk, wv], axis=1).astype(jnp.bfloat16),
        "bqkv": jnp.concatenate([bq, bk, bv], axis=1),
        "wo": wo.astype(jnp.bfloat16), "bo": bo,
        "w1": w1.astype(jnp.bfloat16), "b1": b1,
        "w2": w2.astype(jnp.bfloat16), "b2": b2,
        "norm1_alpha": jnp.ones((1, d_model), jnp.float32),
        "norm1_bias": jnp.zeros((1, d_model), jnp.float32),
        "norm2_alpha": jnp.ones((1, d_model), jnp.float32),
        "norm2_bias": jnp.zeros((1, d_model), jnp.float32),
    }


def encoder_layer_forward(p, x, mask):
    # x: (B, S, D) f32, mask: (B, 1, S).  Dropout layers act as identity (eval).
    # TODO(synk): training-mode dropout (RNG masks) not implemented in-kernel.
    B, S, D = x.shape
    m = B * S
    x_flat = x.reshape(m, D)
    # norm1 + fused QKV projection (bf16 hand-off)
    qkv = norm_qkv(x_flat, p["norm1_alpha"], p["norm1_bias"], p["wqkv"], p["bqkv"])
    # multi-head attention, heads sliced from the QKV slab inside the kernel
    attn = mha(qkv.reshape(B, S, 3 * D), mask, p["heads"])
    # out-proj + residual + norm2 + feed-forward + residual, one fused kernel
    out = proj_norm_ff(attn.reshape(m, D), x_flat, p["wo"], p["bo"],
                       p["norm2_alpha"], p["norm2_bias"],
                       p["w1"], p["b1"], p["w2"], p["b2"])
    return out.reshape(B, S, D)


# ---------------------------------- main ----------------------------------

if __name__ == "__main__":
    d_model, heads, d_ff = 32, 4, 2048
    B, S = 2, 8

    key = jax.random.PRNGKey(0)
    pk, xk = jax.random.split(key)
    params = init_encoder_layer_params(pk, d_model, heads, d_ff)

    x = jax.random.normal(xk, (B, S, d_model), jnp.float32)
    mask_np = np.ones((B, 1, S), dtype=np.float32)
    mask_np[1, 0, 6:] = 0.0          # padding mask on the second sequence
    mask = jnp.asarray(mask_np)

    out = jax.block_until_ready(encoder_layer_forward(params, x, mask))
    assert out.shape == (B, S, d_model) and out.dtype == jnp.float32
    assert bool(jnp.all(jnp.isfinite(out)))
    print("KERNEL_OK")
</pallas_src>

<mosaic_0001>
module attributes {stable_mosaic.version = 11 : i64} {
  func.func @k(%arg0: i32, %arg1: memref<8x128xf32, #tpu.memory_space<vmem>>, %arg2: memref<8x128xf32, #tpu.memory_space<vmem>>) attributes {dimension_semantics = [#tpu.dimension_semantics<arbitrary>], iteration_bounds = array<i64: 1>, scalar_prefetch = 0 : i64, scratch_operands = 0 : i64, tpu.core_type = #tpu.core_type<tc>, window_params = [{pipeline_mode = #tpu.pipeline_mode<synchronous>, transform_indices = @transform_0, window_bounds = array<i64: 8, 128>}, {pipeline_mode = #tpu.pipeline_mode<synchronous>, transform_indices = @transform_1, window_bounds = array<i64: 8, 128>}]} {
    %c0 = arith.constant 0 : index
    %c0_0 = arith.constant 0 : index
    %0 = vector.load %arg1[%c0, %c0_0] : memref<8x128xf32, #tpu.memory_space<vmem>>, vector<8x128xf32>
    %cst = arith.constant 1.000000e+00 : f32
    %1 = vector.broadcast %cst : f32 to vector<8x128xf32>
    %2 = arith.addf %0, %1 : vector<8x128xf32>
    %c0_1 = arith.constant 0 : index
    %c0_2 = arith.constant 0 : index
    %3 = vector.load %arg2[%c0_1, %c0_2] : memref<8x128xf32, #tpu.memory_space<vmem>>, vector<8x128xf32>
    tpu.vector_store %arg2[%c0_1, %c0_2], %2 {strides = array<i32>} : memref<8x128xf32, #tpu.memory_space<vmem>>, vector<8x128xf32>,
    return
  }
  func.func @transform_0(%arg0: i32) -> (i32, i32) {
    %c0_i32 = arith.constant 0 : i32
    %c0_i32_0 = arith.constant 0 : i32
    %c0_i32_1 = arith.constant 0 : i32
    return %c0_i32, %c0_i32_0 : i32, i32
  }
  func.func @transform_1(%arg0: i32) -> (i32, i32) {
    %c0_i32 = arith.constant 0 : i32
    %c0_i32_0 = arith.constant 0 : i32
    %c0_i32_1 = arith.constant 0 : i32
    return %c0_i32, %c0_i32_0 : i32, i32
  }
}

module attributes {stable_mosaic.version = 11 : i64} {
  func.func @_norm_qkv_kernel(%arg0: i32, %arg1: memref<16x32xf32, #tpu.memory_space<vmem>>, %arg2: memref<1x32xf32, #tpu.memory_space<vmem>>, %arg3: memref<1x32xf32, #tpu.memory_space<vmem>>, %arg4: memref<32x96xbf16, #tpu.memory_space<vmem>>, %arg5: memref<1x96xf32, #tpu.memory_space<vmem>>, %arg6: memref<16x96xbf16, #tpu.memory_space<vmem>>) attributes {dimension_semantics = [#tpu.dimension_semantics<parallel>], iteration_bounds = array<i64: 1>, scalar_prefetch = 0 : i64, scratch_operands = 0 : i64, tpu.core_type = #tpu.core_type<tc>, window_params = [{transform_indices = @transform_0, window_bounds = array<i64: 16, 32>}, {pipeline_mode = #tpu.pipeline_mode<synchronous>, transform_indices = @transform_1, window_bounds = array<i64: 1, 32>}, {pipeline_mode = #tpu.pipeline_mode<synchronous>, transform_indices = @transform_2, window_bounds = array<i64: 1, 32>}, {pipeline_mode = #tpu.pipeline_mode<synchronous>, transform_indices = @transform_3, window_bounds = array<i64: 32, 96>}, {pipeline_mode = #tpu.pipeline_mode<synchronous>, transform_indices = @transform_4, window_bounds = array<i64: 1, 96>}, {transform_indices = @transform_5, window_bounds = array<i64: 16, 96>}]} {
    %c0 = arith.constant 0 : index
    %c0_0 = arith.constant 0 : index
    %0 = vector.load %arg1[%c0, %c0_0] : memref<16x32xf32, #tpu.memory_space<vmem>>, vector<16x32xf32>
    %cst = arith.constant dense<0.000000e+00> : vector<16xf32>
    %1 = vector.multi_reduction <add>, %0, %cst [1] : vector<16x32xf32> to vector<16xf32>
    %2 = vector.shape_cast %1 : vector<16xf32> to vector<16x1xf32>
    %cst_1 = arith.constant 3.200000e+01 : f32
    %3 = vector.broadcast %cst_1 : f32 to vector<16x1xf32>
    %4 = arith.divf %2, %3 : vector<16x1xf32>
    %5 = vector.broadcast %4 : vector<16x1xf32> to vector<16x32xf32>
    %6 = arith.subf %0, %5 : vector<16x32xf32>
    %7 = arith.mulf %6, %6 : vector<16x32xf32>
    %cst_2 = arith.constant dense<0.000000e+00> : vector<16xf32>
    %8 = vector.multi_reduction <add>, %7, %cst_2 [1] : vector<16x32xf32> to vector<16xf32>
    %9 = vector.shape_cast %8 : vector<16xf32> to vector<16x1xf32>
    %cst_3 = arith.constant 3.100000e+01 : f32
    %10 = vector.broadcast %cst_3 : f32 to vector<16x1xf32>
    %11 = arith.divf %9, %10 : vector<16x1xf32>
    %c0_4 = arith.constant 0 : index
    %c0_5 = arith.constant 0 : index
    %12 = vector.load %arg2[%c0_4, %c0_5] : memref<1x32xf32, #tpu.memory_space<vmem>>, vector<1x32xf32>
    %13 = vector.broadcast %12 : vector<1x32xf32> to vector<16x32xf32>
    %14 = arith.mulf %13, %6 : vector<16x32xf32>
    %15 = math.sqrt %11 : vector<16x1xf32>
    %cst_6 = arith.constant 9.99999997E-7 : f32
    %16 = vector.broadcast %cst_6 : f32 to vector<16x1xf32>
    %17 = arith.addf %15, %16 : vector<16x1xf32>
    %18 = vector.broadcast %17 : vector<16x1xf32> to vector<16x32xf32>
    %19 = arith.divf %14, %18 : vector<16x32xf32>
    %c0_7 = arith.constant 0 : index
    %c0_8 = arith.constant 0 : index
    %20 = vector.load %arg3[%c0_7, %c0_8] : memref<1x32xf32, #tpu.memory_space<vmem>>, vector<1x32xf32>
    %21 = vector.broadcast %20 : vector<1x32xf32> to vector<16x32xf32>
    %22 = arith.addf %19, %21 : vector<16x32xf32>
    %23 = arith.truncf %22 : vector<16x32xf32> to vector<16x32xbf16>
    %c0_9 = arith.constant 0 : index
    %c0_10 = arith.constant 0 : index
    %24 = vector.load %arg4[%c0_9, %c0_10] : memref<32x96xbf16, #tpu.memory_space<vmem>>, vector<32x96xbf16>
    %cst_11 = arith.constant dense<0.000000e+00> : vector<16x96xf32>
    %25 = tpu.matmul %23, %24, %cst_11 {dimension_numbers = #tpu.dot_dimension_numbers<[1], [0], [0], [1], [0, 0, 1, 1], [], []>} : vector<16x32xbf16>, vector<32x96xbf16>, vector<16x96xf32> -> vector<16x96xf32>
    %c0_12 = arith.constant 0 : index
    %c0_13 = arith.constant 0 : index
    %26 = vector.load %arg5[%c0_12, %c0_13] : memref<1x96xf32, #tpu.memory_space<vmem>>, vector<1x96xf32>
    %27 = vector.broadcast %26 : vector<1x96xf32> to vector<16x96xf32>
    %28 = arith.addf %25, %27 : vector<16x96xf32>
    %29 = arith.truncf %28 : vector<16x96xf32> to vector<16x96xbf16>
    %c0_14 = arith.constant 0 : index
    %c0_15 = arith.constant 0 : index
    %30 = vector.load %arg6[%c0_14, %c0_15] : memref<16x96xbf16, #tpu.memory_space<vmem>>, vector<16x96xbf16>
    tpu.vector_store %arg6[%c0_14, %c0_15], %29 {strides = array<i32>} : memref<16x96xbf16, #tpu.memory_space<vmem>>, vector<16x96xbf16>,
    return
  }
  func.func @transform_0(%arg0: i32) -> (i32, i32) {
    %c0_i32 = arith.constant 0 : i32
    %c0_i32_0 = arith.constant 0 : i32
    return %arg0, %c0_i32 : i32, i32
  }
  func.func @transform_1(%arg0: i32) -> (i32, i32) {
    %c0_i32 = arith.constant 0 : i32
    %c0_i32_0 = arith.constant 0 : i32
    %c0_i32_1 = arith.constant 0 : i32
    return %c0_i32, %c0_i32_0 : i32, i32
  }
  func.func @transform_2(%arg0: i32) -> (i32, i32) {
    %c0_i32 = arith.constant 0 : i32
    %c0_i32_0 = arith.constant 0 : i32
    %c0_i32_1 = arith.constant 0 : i32
    return %c0_i32, %c0_i32_0 : i32, i32
  }
  func.func @transform_3(%arg0: i32) -> (i32, i32) {
    %c0_i32 = arith.constant 0 : i32
    %c0_i32_0 = arith.constant 0 : i32
    %c0_i32_1 = arith.constant 0 : i32
    return %c0_i32, %c0_i32_0 : i32, i32
  }
  func.func @transform_4(%arg0: i32) -> (i32, i32) {
    %c0_i32 = arith.constant 0 : i32
    %c0_i32_0 = arith.constant 0 : i32
    %c0_i32_1 = arith.constant 0 : i32
    return %c0_i32, %c0_i32_0 : i32, i32
  }
  func.func @transform_5(%arg0: i32) -> (i32, i32) {
    %c0_i32 = arith.constant 0 : i32
    %c0_i32_0 = arith.constant 0 : i32
    return %arg0, %c0_i32 : i32, i32
  }
}

</mosaic_0001>

<llo_original>
// kernel: tpu_custom_call.1
$region0: #{tpu_custom_call.1}
  #allocation0 [shape = 'u32[]', space=smem, size = 0x4, offset = 0x4, fixed_abs, tag = 'smem constant byte address 0x4 - core index']
  #allocation1 [shape = 'u32[72,128]{1,0:T(1,128)}', space=vmem, size = 0x9000, scoped, tag = 'internal scratch']
  %s0 = inlined_call_operand.hbm [shape: f32[8,128], index: 0, kind: input, shape index: {}]
  %s1 = inlined_call_operand.hbm [shape: f32[8,128], index: 1, kind: output, shape index: {}]
  %s2 = sld [smem:[#allocation0]]
  $region18: #{tpu_custom_call.1} parent=0
    _
  %s4 = ssub.s32 1, %s2
  %s5 = scalar_select 0, %s4, %s2
  $region1: #{tpu_custom_call.1} parent=0
    #allocation2 [shape = 'u8[4096]{0}', space=vmem, size = 0x1000, scoped, tag = 'input window, operand 0, single buffered']
    #allocation3 [shape = 's32[1]{0}', space=sflag, size = 0x4, scoped, tag = 'scoped memory for tpu_custom_call.1']
    #allocation4 [shape = 's32[1]{0}', space=sflag, size = 0x4, scoped, tag = 'scoped memory for tpu_custom_call.1']
    #allocation5 [shape = 'u8[4096]{0}', space=vmem, size = 0x1000, scoped, tag = 'output window, operand 0, single buffered']
    %6 = vsyncpa [#allocation3], 0
    %7 = vsyncpa [#allocation4], 0
    // Predicated region
    $region2: #{tpu_custom_call.1} parent=1 // pred_check
      _
    $region3: #{tpu_custom_call.1} parent=1 // pred_check_branch
      %9 = sbr.rel (0) target = $region5
    $region4: #{tpu_custom_call.1} parent=1 // pred_region
      %11 = vsyncadd [#allocation3], 0
      %s13 = sshll.u32 %s0, 4
      %s14 = int_to_ptr.hbm [resolvable:$true] %s13
      %s15 = sshll.u32 [#allocation2], 4
      %s16 = int_to_ptr.vmem [resolvable:$true] %s15
      %18 = dma.hbm_to_vmem [thread:$0]  %s14, 128, %s16, [#allocation3]
    $region5: #{tpu_custom_call.1} parent=1 // pred_fallthru
      _
    // Predicated region
    $region6: #{tpu_custom_call.1} parent=1 // pred_check
      _
    $region7: #{tpu_custom_call.1} parent=1 // pred_check_branch
      %20 = sbr.rel (0) target = $region9
    $region8: #{tpu_custom_call.1} parent=1 // pred_region
      %22 = dma.done [#allocation3], 128
    $region9: #{tpu_custom_call.1} parent=1 // pred_fallthru
      _
    %v23 = vld [vmem:[#allocation2] sm:$0xff]
    %v24 = vadd.f32 %v23, 1.0
    %25 = vst [vmem:[#allocation5] sm:$0xff] %v24
    // Predicated region
    $region10: #{tpu_custom_call.1} parent=1 // pred_check
      _
    $region11: #{tpu_custom_call.1} parent=1 // pred_check_branch
      %27 = sbr.rel (0) target = $region13
    $region12: #{tpu_custom_call.1} parent=1 // pred_region
      %29 = vsyncadd [#allocation4], 0
      %s31 = sshll.u32 [#allocation5], 4
      %s32 = int_to_ptr.vmem [resolvable:$true] %s31
      %s33 = sshll.u32 %s1, 4
      %s34 = int_to_ptr.hbm [resolvable:$true] %s33
      %36 = dma.vmem_to_hbm [thread:$0]  %s32, 128, %s34, [#allocation4]
    $region13: #{tpu_custom_call.1} parent=1 // pred_fallthru
      _
    // Predicated region
    $region14: #{tpu_custom_call.1} parent=1 // pred_check
      _
    $region15: #{tpu_custom_call.1} parent=1 // pred_check_branch
      %38 = sbr.rel (0) target = $region17
    $region16: #{tpu_custom_call.1} parent=1 // pred_region
      %40 = dma.done [#allocation4], 128
    $region17: #{tpu_custom_call.1} parent=1 // pred_fallthru
      _
    %41 = vsyncpa [#allocation3], 1
    %42 = vsyncpa [#allocation4], 1

// kernel: tpu_custom_call.1
$region0: #{tpu_custom_call.1}
  #allocation0 [shape = 'u32[]', space=smem, size = 0x4, offset = 0x4, fixed_abs, tag = 'smem constant byte address 0x4 - core index']
  #allocation1 [shape = 'u32[72,128]{1,0:T(1,128)}', space=vmem, size = 0x9000, scoped, tag = 'internal scratch']
  %s0 = inlined_call_operand.hbm [shape: f32[16,32], index: 0, kind: input, shape index: {}]
  %s1 = inlined_call_operand.hbm [shape: f32[1,32], index: 1, kind: input, shape index: {}]
  %s2 = inlined_call_operand.vmem [shape: f32[1,32], index: 2, kind: input, shape index: {}]
  %s3 = inlined_call_operand.hbm [shape: bf16[32,96], index: 3, kind: input, shape index: {}]
  %s4 = inlined_call_operand.vmem [shape: f32[1,96], index: 4, kind: input, shape index: {}]
  %s5 = inlined_call_operand.hbm [shape: bf16[16,96], index: 5, kind: output, shape index: {}]
  %s6 = sld [smem:[#allocation0]]
  $region42: #{tpu_custom_call.1} parent=0
    _
  %s8 = ssub.s32 1, %s6
  %s9 = scalar_select 0, %s8, %s6
  $region1: #{tpu_custom_call.1} parent=0
    #allocation2 [shape = 'u8[8192]{0}', space=vmem, size = 0x2000, scoped, tag = 'input window, operand 0, single buffered']
    #allocation3 [shape = 's32[1]{0}', space=sflag, size = 0x4, scoped, tag = 'scoped memory for tpu_custom_call.1']
    #allocation4 [shape = 's32[1]{0}', space=sflag, size = 0x4, scoped, tag = 'scoped memory for tpu_custom_call.1']
    #allocation5 [shape = 'u8[512]{0}', space=vmem, size = 0x400, scoped, tag = 'input window, operand 1, single buffered']
    #allocation6 [shape = 's32[1]{0}', space=sflag, size = 0x4, scoped, tag = 'scoped memory for tpu_custom_call.1']
    #allocation7 [shape = 'u8[8192]{0}', space=vmem, size = 0x2000, scoped, tag = 'input window, operand 3, single buffered']
    #allocation8 [shape = 'u8[4096]{0}', space=vmem, size = 0x1000, scoped, tag = 'output window, operand 0, single buffered']
    %10 = vsyncpa [#allocation3], 0
    %11 = vsyncpa [#allocation6], 0
    %12 = vsyncpa [#allocation4], 0
    // Predicated region
    $region2: #{tpu_custom_call.1} parent=1 // pred_check
      _
    $region3: #{tpu_custom_call.1} parent=1 // pred_check_branch
      %14 = sbr.rel (0) target = $region5
    $region4: #{tpu_custom_call.1} parent=1 // pred_region
      %16 = vsyncadd [#allocation3], 0
      %s17 = sshll.u32 %s0, 4
      %s18 = int_to_ptr.hbm [resolvable:$true] %s17
      %s19 = sshll.u32 [#allocation2], 4
      %s20 = int_to_ptr.vmem [resolvable:$true] %s19
      %25 = dma.hbm_to_vmem [thread:$0]  %s18, 256, %s20, [#allocation3], 128, 128, 8
    $region5: #{tpu_custom_call.1} parent=1 // pred_fallthru
      _
    // Predicated region
    $region6: #{tpu_custom_call.1} parent=1 // pred_check
      _
    $region7: #{tpu_custom_call.1} parent=1 // pred_check_branch
      %27 = sbr.rel (0) target = $region9
    $region8: #{tpu_custom_call.1} parent=1 // pred_region
      %29 = vsyncadd [#allocation6], 0
      %s31 = sshll.u32 %s1, 4
      %s32 = int_to_ptr.hbm [resolvable:$true] %s31
      %s33 = sshll.u32 [#allocation5], 4
      %s34 = int_to_ptr.vmem [resolvable:$true] %s33
      %36 = dma.hbm_to_vmem [thread:$0]  %s32, 16, %s34, [#allocation6]
    $region9: #{tpu_custom_call.1} parent=1 // pred_fallthru
      _
    // Predicated region
    $region10: #{tpu_custom_call.1} parent=1 // pred_check
      _
    $region11: #{tpu_custom_call.1} parent=1 // pred_check_branch
      %38 = sbr.rel (0) target = $region13
    $region12: #{tpu_custom_call.1} parent=1 // pred_region
      _
    $region13: #{tpu_custom_call.1} parent=1 // pred_fallthru
      _
    // Predicated region
    $region14: #{tpu_custom_call.1} parent=1 // pred_check
      _
    $region15: #{tpu_custom_call.1} parent=1 // pred_check_branch
      %40 = sbr.rel (0) target = $region17
    $region16: #{tpu_custom_call.1} parent=1 // pred_region
      %42 = vsyncadd [#allocation6], 0
      %s43 = sshll.u32 %s3, 4
      %s44 = int_to_ptr.hbm [resolvable:$true] %s43
      %s45 = sshll.u32 [#allocation7], 4
      %s46 = int_to_ptr.vmem [resolvable:$true] %s45
      %51 = dma.hbm_to_vmem [thread:$0]  %s44, 256, %s46, [#allocation6], 64, 64, 4
    $region17: #{tpu_custom_call.1} parent=1 // pred_fallthru
      _
    // Predicated region
    $region18: #{tpu_custom_call.1} parent=1 // pred_check
      _
    $region19: #{tpu_custom_call.1} parent=1 // pred_check_branch
      %53 = sbr.rel (0) target = $region21
    $region20: #{tpu_custom_call.1} parent=1 // pred_region
      _
    $region21: #{tpu_custom_call.1} parent=1 // pred_fallthru
      _
    // Predicated region
    $region22: #{tpu_custom_call.1} parent=1 // pred_check
      _
    $region23: #{tpu_custom_call.1} parent=1 // pred_check_branch
      %55 = sbr.rel (0) target = $region25
    $region24: #{tpu_custom_call.1} parent=1 // pred_region
      %57 = dma.done [#allocation3], 256
    $region25: #{tpu_custom_call.1} parent=1 // pred_fallthru
      _
    // Predicated region
    $region26: #{tpu_custom_call.1} parent=1 // pred_check
      _
    $region27: #{tpu_custom_call.1} parent=1 // pred_check_branch
      %59 = sbr.rel (0) target = $region29
    $region28: #{tpu_custom_call.1} parent=1 // pred_region
      %61 = dma.done [#allocation6], 16
    $region29: #{tpu_custom_call.1} parent=1 // pred_fallthru
      _
    // Predicated region
    $region30: #{tpu_custom_call.1} parent=1 // pred_check
      _
    $region31: #{tpu_custom_call.1} parent=1 // pred_check_branch
      %63 = sbr.rel (0) target = $region33
    $region32: #{tpu_custom_call.1} parent=1 // pred_region
      %65 = dma.done [#allocation6], 256
    $region33: #{tpu_custom_call.1} parent=1 // pred_fallthru
      _
    %v67 = vld [vmem:[#allocation2] sm:$0xff]
    %v68 = vld [vmem:[#allocation2 + $0x8] sm:$0xff]
    %vm69 = vcmask 261120
    %v70 = vsel %vm69, %v67, 0.0
    %71 = vadd.xlane.f32.xlu0 %v70
    %v72 = vpop.xlane.xlu0 %71
    %v73 = vsel %vm69, %v68, 0.0
    %74 = vadd.xlane.f32.xlu0 %v73
    %v75 = vpop.xlane.xlu0 %74
    %v76 = vrcp.pop 32.0
    %v77 = vmul.f32 32.0, %v76
    %v78 = vsub.f32 1.0, %v77
    %v79 = vmul.f32 %v76, %v78
    %v80 = vadd.f32 %v76, %v79
    %vm81 = vweird.f32 %v76
    %v82 = vsel %vm81, %v76, %v80
    %v83 = vmul.f32 %v72, %v82
    %v84 = vmul.f32 %v75, %v82
    %v85 = vsub.f32 %v67, %v83
    %v86 = vsub.f32 %v68, %v84
    %v87 = vmul.f32 %v85, %v85
    %v88 = vmul.f32 %v86, %v86
    %v89 = vsel %vm69, %v87, 0.0
    %90 = vadd.xlane.f32.xlu0 %v89
    %v91 = vpop.xlane.xlu0 %90
    %v92 = vsel %vm69, %v88, 0.0
    %93 = vadd.xlane.f32.xlu0 %v92
    %v94 = vpop.xlane.xlu0 %93
    %v95 = vrcp.pop 31.0
    %v96 = vmul.f32 31.0, %v95
    %v97 = vsub.f32 1.0, %v96
    %v98 = vmul.f32 %v95, %v97
    %v99 = vadd.f32 %v95, %v98
    %vm100 = vweird.f32 %v95
    %v101 = vsel %vm100, %v95, %v99
    %v102 = vmul.f32 %v91, %v101
    %v103 = vmul.f32 %v94, %v101
    %v104 = vld [vmem:[#allocation5] sm:$0x1]
    %v106 = vperm.slane %v104, 0
    %v108 = vmul.f32 %v106, %v85
    %v109 = vmul.f32 %v106, %v86
    %v110 = vrsqrt.pop %v102
    %v111 = vmul.f32 %v110, %v102
    %v112 = vmul.f32 %v111, %v110
    %v113 = vmul.f32 0.5, %v112
    %v114 = vsub.f32 1.5, %v113
    %v115 = vmul.f32 %v110, %v114
    %v116 = vmul.f32 %v102, %v115
    %vm117 = vcmp.eq.f32.partialorder %v102, inf
    %v118 = vsel %vm117, %v102, %v116
    %vm119 = vcmp.eq.f32.partialorder %v102, 0.0
    %v120 = vand.u32 %v102, 2147483648
    %v121 = vsel %vm119, %v120, %v118
    %v122 = vrsqrt.pop %v103
    %v123 = vmul.f32 %v122, %v103
    %v124 = vmul.f32 %v123, %v122
    %v125 = vmul.f32 0.5, %v124
    %v126 = vsub.f32 1.5, %v125
    %v127 = vmul.f32 %v122, %v126
    %v128 = vmul.f32 %v103, %v127
    %vm129 = vcmp.eq.f32.partialorder %v103, inf
    %v130 = vsel %vm129, %v103, %v128
    %vm131 = vcmp.eq.f32.partialorder %v103, 0.0
    %v132 = vand.u32 %v103, 2147483648
    %v133 = vsel %vm131, %v132, %v130
    %v134 = vadd.f32 %v121, 1e-06
    %v135 = vadd.f32 %v133, 1e-06
    %v136 = vrcp.pop %v134
    %v137 = vmul.f32 %v134, %v136
    %v138 = vsub.f32 1.0, %v137
    %v139 = vmul.f32 %v136, %v138
    %v140 = vadd.f32 %v136, %v139
    %vm141 = vweird.f32 %v134
    %vm142 = vweird.f32 %v136
    %vm143 = vmor %vm141, %vm142
    %v144 = vsel %vm143, %v136, %v140
    %v145 = vand.u32 2147483647, %v134
    %vm146 = vcmp.eq.f32.partialorder %v145, 8.507059e+37
    %v147 = vand.u32 %v134, 2147483648
    %v148 = vor.u32 1.1754944e-38, %v147
    %v149 = vsel %vm146, %v148, %v144
    %v150 = vmul.f32 %v108, %v149
    %v151 = vrcp.pop %v135
    %v152 = vmul.f32 %v135, %v151
    %v153 = vsub.f32 1.0, %v152
    %v154 = vmul.f32 %v151, %v153
    %v155 = vadd.f32 %v151, %v154
    %vm156 = vweird.f32 %v135
    %vm157 = vweird.f32 %v151
    %vm158 = vmor %vm156, %vm157
    %v159 = vsel %vm158, %v151, %v155
    %v160 = vand.u32 2147483647, %v135
    %vm161 = vcmp.eq.f32.partialorder %v160, 8.507059e+37
    %v162 = vand.u32 %v135, 2147483648
    %v163 = vor.u32 1.1754944e-38, %v162
    %v164 = vsel %vm161, %v163, %v159
    %v165 = vmul.f32 %v109, %v164
    %v166 = vld [vmem:[%s2] sm:$0x1]
    %v168 = vperm.slane %v166, 0
    %v170 = vadd.f32 %v150, %v168
    %v171 = vadd.f32 %v165, %v168
    %v172 = vpack.c.bf16 %v171, %v170
    %v173 = vld [vmem:[#allocation7] sm:$0xf]
    %v174 = vld [vmem:[#allocation7 + $0x4] sm:$0xf]
    %v175 = vld [vmem:[#allocation7 + $0x8] sm:$0xf]
    %v176 = vld [vmem:[#allocation7 + $0xc] sm:$0xf]
    %v177 = vld [vmem:[%s4] sm:$0x1]
    %v179 = vperm.slane %v177, 0
    %v185 = vunpack.c.l.b16 %v173
    %v186 = vunpack.c.l.b16 %v174
    %v187 = vunpack.c.l.b16 %v175
    %v188 = vunpack.c.l.b16 %v176
    %v189 = vpack.c.b16 %v186, %v185
    %v190 = vpack.c.b16 %v188, %v187
    %v194 = vsel %vm69, %v172, 0
    %196 = vmatpush.bf16.msra.mxu0 0
    %197 = vmatpush.bf16.msra.mxu0 0
    %198 = vmatpush.bf16.msra.mxu0 0
    %199 = vmatpush.bf16.msra.mxu0 0
    %200 = vmatpush.bf16.msra.mxu0 0
    %201 = vmatpush.bf16.msra.mxu0 0
    %202 = vmatpush.bf16.msra.mxu0 %v190
    %203 = vmatpush.bf16.msra.mxu0 %v189
    %204 = vmatmul.bf16.gmra.mxu0 %v194
    %v205 = vpop.f32.mrf.mxu0
    %v206 = vadd.f32 %v179, %v205
    %v207 = vpop.f32.mrf.mxu0
    %v208 = vadd.f32 %v179, %v207
    %209 = vdwg.mxu0
    %v210 = vpack.c.bf16 %v206, %v206
    %v211 = vpack.c.bf16 %v208, %v208
    %vm212 = vcmask 781312
    %213 = vst.msk [vmem:[#allocation8] sm:$0xf] %vm212, %v210
    %214 = vst.msk [vmem:[#allocation8 + $0x4] sm:$0xf] %vm212, %v211
    // Predicated region
    $region34: #{tpu_custom_call.1} parent=1 // pred_check
      _
    $region35: #{tpu_custom_call.1} parent=1 // pred_check_branch
      %216 = sbr.rel (0) target = $region37
    $region36: #{tpu_custom_call.1} parent=1 // pred_region
      %218 = vsyncadd [#allocation4], 0
      %s219 = sshll.u32 [#allocation8], 4
      %s220 = int_to_ptr.vmem [resolvable:$true] %s219
      %s221 = sshll.u32 %s5, 4
      %s222 = int_to_ptr.hbm [resolvable:$true] %s221
      %227 = dma.vmem_to_hbm [thread:$0]  %s220, 128, %s222, [#allocation4], 64, 64, 4
    $region37: #{tpu_custom_call.1} parent=1 // pred_fallthru
      _
    // Predicated region
    $region38: #{tpu_custom_call.1} parent=1 // pred_check
      _
    $region39: #{tpu_custom_call.1} parent=1 // pred_check_branch
      %229 = sbr.rel (0) target = $region41
    $region40: #{tpu_custom_call.1} parent=1 // pred_region
      %231 = dma.done [#allocation4], 128
    $region41: #{tpu_custom_call.1} parent=1 // pred_fallthru
      _
    %232 = vsyncpa [#allocation3], 1
    %233 = vsyncpa [#allocation6], 1
    %234 = vsyncpa [#allocation4], 1

</llo_original>
